<compile_context>
chip_gen: v7x
topology: tpu7x:2x2x1
jax: 0.10.0
libtpu: 0.0.40
codegen_flags: <defaults>
</compile_context>

<pallas_src>
import math

import jax
import jax.numpy as jnp
from jax import lax
from jax.experimental import pallas as pl
from jax.experimental.pallas import tpu as pltpu


_INV_SQRT2 = 1.0 / math.sqrt(2.0)


def _mcp_kernel(x_ref, w1_ref, b1_ref, w2_ref, b2_ref, o_ref):
    # x_ref : (bn, C,  TP)  images on the leading axis, channels on sublanes,
    #                       pixels on the 128-lane axis (lane-dense I/O).
    # w1_ref: (midc, C)     conv1 weight, PyTorch orientation (no transpose).
    # b1_ref: (midc, 1)     f32
    # w2_ref: (ouc, midc)   conv2 weight.
    # b2_ref: (ouc, 1)      f32
    # o_ref : (bn, ouc, TP) lane-dense output tile.
    w1 = w1_ref[...]
    w2 = w2_ref[...]
    b1 = b1_ref[...]
    b2 = b2_ref[...]
    bn = x_ref.shape[0]
    # Short unrolled loop over the images folded into this block (bn is a
    # small static count chosen by the wrapper); each iteration is a plain
    # 2-D MXU matmul with f32 accumulation.
    for b in range(bn):
        x = x_ref[b]                                              # (C, TP)
        h = jnp.dot(w1, x, preferred_element_type=jnp.float32) + b1
        # Exact (erf) GELU in f32, matching nn.GELU() default.
        h = 0.5 * h * (1.0 + lax.erf(h * _INV_SQRT2))
        y = jnp.dot(w2, h.astype(w2.dtype),
                    preferred_element_type=jnp.float32) + b2
        o_ref[b] = y.astype(o_ref.dtype)


def _round_down_128(v):
    return (v // 128) * 128


def _tpu_vmem_capacity_bytes():
    """Physical VMEM per TensorCore, with a conservative (v7x-sized) fallback."""
    try:
        info = pltpu.get_tpu_info()
        cap = int(getattr(info, "vmem_capacity_bytes", 0) or 0)
        if cap > 0:
            return cap
    except Exception:
        pass
    return 64 << 20  # v7x per-core size: safe lower bound for v5e/v6e/v7x.


def mcp_forward(x_nchw, w1, b1, w2, b2, *, compute_dtype=None,
                target_step_bytes=6 << 20, max_batch_per_step=32):
    """Fused eval-mode Mcp forward.

    x_nchw: [N, inc, H, W]; w1: [midc, inc]; b1: [midc]; w2: [ouc, midc]; b2: [ouc].
    compute_dtype: optional operand dtype (e.g. jnp.bfloat16) for x/w1/w2 —
      halves HBM traffic on this bandwidth-bound kernel; accumulation, bias
      adds and the GELU stay in f32.
    """
    N, C, H, W = x_nchw.shape
    midc, inc = w1.shape
    ouc = w2.shape[0]
    assert inc == C

    HW = H * W
    # Free (contiguous) view: NCHW -> [N, C, H*W].  No transpose, no pad copy.
    x3 = x_nchw.reshape(N, C, HW)

    if compute_dtype is not None:
        x3 = x3.astype(compute_dtype)
        w1 = w1.astype(compute_dtype)
        w2 = w2.astype(compute_dtype)
    out_dtype = x3.dtype

    itemsize = jnp.dtype(x3.dtype).itemsize
    out_itemsize = jnp.dtype(out_dtype).itemsize
    b1c = b1.reshape(midc, 1).astype(jnp.float32)
    b2c = b2.reshape(ouc, 1).astype(jnp.float32)
    weight_bytes = (w1.size * jnp.dtype(w1.dtype).itemsize
                    + w2.size * jnp.dtype(w2.dtype).itemsize
                    + b1c.size * 4 + b2c.size * 4)

    # ---- C/ouc-aware tile sizing -------------------------------------------
    # Each grid step moves per_pix_bytes per pixel (x in + y out).  Target a
    # multi-MiB step to amortize the ~0.35 us fixed per-step cost, while the
    # double-buffered working set 2*(x_block + y_block) + weights must fit the
    # per-generation VMEM (64 MiB on v7x, 128 MiB on v5e/v6e).
    vmem_cap = _tpu_vmem_capacity_bytes()
    usable_vmem = int(vmem_cap * 0.7)          # headroom for compiler scratch.
    per_pix_bytes = C * itemsize + ouc * out_itemsize
    max_step_bytes = max(per_pix_bytes * 128,
                         (usable_vmem - weight_bytes) // 2)
    step_bytes = max(per_pix_bytes, min(target_step_bytes, max_step_bytes))

    bn = 1
    if HW * per_pix_bytes <= step_bytes:
        # Small spatial extent: one pixel tile covers the whole image; fold
        # several images into each grid step so DMAs stay multi-MiB.
        tile_pix = HW
        bn = max(1, min(N, max_batch_per_step,
                        step_bytes // max(1, HW * per_pix_bytes)))
        if N >= 2:
            bn = min(bn, N // 2)       # keep >=2 steps: feed both v7x TCs.
        bn = max(1, bn)
        while bn > 1 and N % bn != 0:  # avoid a ragged batch tail.
            bn -= 1
        grid_p = 1
        if N == 1 and HW >= 256:
            # Single image, single tile: split H*W into two lane-aligned tiles
            # so the parallel grid has >= 2 steps (two TensorCores on v7x).
            half = -(-HW // 2)
            tile_pix = ((half + 127) // 128) * 128
            grid_p = pl.cdiv(HW, tile_pix)
    else:
        # Large spatial extent: pick a 128-multiple pixel tile near the byte
        # target, preferring a divisor of H*W so there is no ragged tail
        # (no masked partial stores, no padded columns through erf).
        tile_pix = max(128, _round_down_128(step_bytes // per_pix_bytes))
        cand = tile_pix
        while cand >= max(128, tile_pix // 2):
            if HW % cand == 0:
                tile_pix = cand
                break
            cand -= 128
        grid_p = pl.cdiv(HW, tile_pix)

    # ---- explicit VMEM budget ----------------------------------------------
    block_in = bn * C * tile_pix * itemsize
    block_out = bn * ouc * tile_pix * out_itemsize
    working = 2 * (block_in + block_out) + weight_bytes     # double-buffered.
    vmem_limit = int(min(vmem_cap - (8 << 20),
                         max(48 << 20, working + (8 << 20))))
    vmem_limit = max(vmem_limit, working + (2 << 20))

    grid = (pl.cdiv(N, bn), grid_p)

    out3 = pl.pallas_call(
        _mcp_kernel,
        out_shape=jax.ShapeDtypeStruct((N, ouc, HW), out_dtype),
        grid_spec=pltpu.PrefetchScalarGridSpec(
            num_scalar_prefetch=0,
            grid=grid,
            in_specs=[
                pl.BlockSpec((bn, C, tile_pix), lambda n, p: (n, 0, p)),
                # Weights/biases: single block, resident in VMEM across grid.
                pl.BlockSpec((midc, inc), lambda n, p: (0, 0)),
                pl.BlockSpec((midc, 1), lambda n, p: (0, 0)),
                pl.BlockSpec((ouc, midc), lambda n, p: (0, 0)),
                pl.BlockSpec((ouc, 1), lambda n, p: (0, 0)),
            ],
            out_specs=pl.BlockSpec((bn, ouc, tile_pix), lambda n, p: (n, 0, p)),
        ),
        compiler_params=pltpu.CompilerParams(
            dimension_semantics=("parallel", "parallel"),
            vmem_limit_bytes=vmem_limit,
        ),
    )(x3, w1, b1c, w2, b2c)

    # Free reshape back to NCHW.
    return out3.reshape(N, ouc, H, W)


def make_mcp_params(key, inc, ouc=0, mcp_ratio=0.0625, is_ouc_diff=False):
    """Deterministic synthetic parameters matching Mcp.__init__ shapes."""
    if not is_ouc_diff:
        out_c = inc
    elif ouc == 0:
        out_c = int(inc * mcp_ratio)
    else:
        out_c = ouc
    midc = int(inc * mcp_ratio)

    k1, k2, k3, k4 = jax.random.split(key, 4)
    bound1 = 1.0 / math.sqrt(inc)
    bound2 = 1.0 / math.sqrt(midc)
    w1 = jax.random.uniform(k1, (midc, inc), jnp.float32, -bound1, bound1)
    b1 = jax.random.uniform(k2, (midc,), jnp.float32, -bound1, bound1)
    w2 = jax.random.uniform(k3, (out_c, midc), jnp.float32, -bound2, bound2)
    b2 = jax.random.uniform(k4, (out_c,), jnp.float32, -bound2, bound2)
    return w1, b1, w2, b2


def mcp_reference(x_nchw, w1, b1, w2, b2):
    """Pure-JAX reference (eval-mode Mcp)."""
    N, C, H, W = x_nchw.shape
    x2d = jnp.transpose(x_nchw, (0, 2, 3, 1)).reshape(-1, C)
    h = x2d @ w1.T + b1
    h = 0.5 * h * (1.0 + lax.erf(h / math.sqrt(2.0)))
    y = h @ w2.T + b2
    y = y.reshape(N, H, W, w2.shape[0])
    return jnp.transpose(y, (0, 3, 1, 2))


if __name__ == "__main__":
    key = jax.random.PRNGKey(0)
    kx, kp = jax.random.split(key)

    # Small shapes: inc=64 -> midc = int(64*0.0625) = 4, ouc = inc = 64.
    N, inc, H, W = 2, 64, 16, 16
    x = jax.random.normal(kx, (N, inc, H, W), jnp.float32)
    w1, b1, w2, b2 = make_mcp_params(kp, inc)

    ref = mcp_reference(x, w1, b1, w2, b2)

    # f32 path: exact parity with the PyTorch eval-mode forward.
    out = jax.block_until_ready(mcp_forward(x, w1, b1, w2, b2))
    assert out.shape == (N, inc, H, W), out.shape
    assert jnp.allclose(out, ref, atol=1e-4, rtol=1e-4), float(
        jnp.max(jnp.abs(out - ref)))

    # bf16 operand path (halves HBM traffic on this bandwidth-bound kernel);
    # accumulation / bias / GELU stay in f32, so it tracks the reference.
    out_bf16 = jax.block_until_ready(
        mcp_forward(x, w1, b1, w2, b2, compute_dtype=jnp.bfloat16))
    max_err = float(jnp.max(jnp.abs(out_bf16.astype(jnp.float32) - ref)))
    assert max_err < 0.1, max_err

    print("KERNEL_OK")
</pallas_src>

<mosaic_0001>
module attributes {stable_mosaic.version = 11 : i64} {
  func.func @_mcp_kernel(%arg0: i32, %arg1: i32, %arg2: memref<1x64x256xf32, #tpu.memory_space<vmem>>, %arg3: memref<4x64xf32, #tpu.memory_space<vmem>>, %arg4: memref<4x1xf32, #tpu.memory_space<vmem>>, %arg5: memref<64x4xf32, #tpu.memory_space<vmem>>, %arg6: memref<64x1xf32, #tpu.memory_space<vmem>>, %arg7: memref<1x64x256xf32, #tpu.memory_space<vmem>>) attributes {dimension_semantics = [#tpu.dimension_semantics<parallel>, #tpu.dimension_semantics<parallel>], iteration_bounds = array<i64: 2, 1>, scalar_prefetch = 0 : i64, scratch_operands = 0 : i64, tpu.core_type = #tpu.core_type<tc>, window_params = [{transform_indices = @transform_0, window_bounds = array<i64: 1, 64, 256>}, {pipeline_mode = #tpu.pipeline_mode<synchronous>, transform_indices = @transform_1, window_bounds = array<i64: 4, 64>}, {pipeline_mode = #tpu.pipeline_mode<synchronous>, transform_indices = @transform_2, window_bounds = array<i64: 4, 1>}, {pipeline_mode = #tpu.pipeline_mode<synchronous>, transform_indices = @transform_3, window_bounds = array<i64: 64, 4>}, {pipeline_mode = #tpu.pipeline_mode<synchronous>, transform_indices = @transform_4, window_bounds = array<i64: 64, 1>}, {transform_indices = @transform_5, window_bounds = array<i64: 1, 64, 256>}]} {
    %c0 = arith.constant 0 : index
    %c0_0 = arith.constant 0 : index
    %0 = vector.load %arg3[%c0, %c0_0] : memref<4x64xf32, #tpu.memory_space<vmem>>, vector<4x64xf32>
    %c0_1 = arith.constant 0 : index
    %c0_2 = arith.constant 0 : index
    %1 = vector.load %arg5[%c0_1, %c0_2] : memref<64x4xf32, #tpu.memory_space<vmem>>, vector<64x4xf32>
    %c0_3 = arith.constant 0 : index
    %c0_4 = arith.constant 0 : index
    %2 = vector.load %arg4[%c0_3, %c0_4] : memref<4x1xf32, #tpu.memory_space<vmem>>, vector<4x1xf32>
    %c0_5 = arith.constant 0 : index
    %c0_6 = arith.constant 0 : index
    %3 = vector.load %arg6[%c0_5, %c0_6] : memref<64x1xf32, #tpu.memory_space<vmem>>, vector<64x1xf32>
    %c0_7 = arith.constant 0 : index
    %c0_8 = arith.constant 0 : index
    %c0_9 = arith.constant 0 : index
    %4 = vector.load %arg2[%c0_7, %c0_8, %c0_9] : memref<1x64x256xf32, #tpu.memory_space<vmem>>, vector<1x64x256xf32>
    %5 = vector.shape_cast %4 : vector<1x64x256xf32> to vector<64x256xf32>
    %cst = arith.constant dense<0.000000e+00> : vector<4x256xf32>
    %6 = tpu.matmul %0, %5, %cst {dimension_numbers = #tpu.dot_dimension_numbers<[1], [0], [0], [1], [0, 0, 1, 1], [], []>} : vector<4x64xf32>, vector<64x256xf32>, vector<4x256xf32> -> vector<4x256xf32>
    %7 = vector.broadcast %2 : vector<4x1xf32> to vector<4x256xf32>
    %8 = arith.addf %6, %7 : vector<4x256xf32>
    %cst_10 = arith.constant 5.000000e-01 : f32
    %9 = vector.broadcast %cst_10 : f32 to vector<4x256xf32>
    %10 = arith.mulf %9, %8 : vector<4x256xf32>
    %cst_11 = arith.constant 0.707106769 : f32
    %11 = vector.broadcast %cst_11 : f32 to vector<4x256xf32>
    %12 = arith.mulf %8, %11 : vector<4x256xf32>
    %13 = math.erf %12 : vector<4x256xf32>
    %cst_12 = arith.constant 1.000000e+00 : f32
    %14 = vector.broadcast %cst_12 : f32 to vector<4x256xf32>
    %15 = arith.addf %14, %13 : vector<4x256xf32>
    %16 = arith.mulf %10, %15 : vector<4x256xf32>
    %cst_13 = arith.constant dense<0.000000e+00> : vector<64x256xf32>
    %17 = tpu.matmul %1, %16, %cst_13 {dimension_numbers = #tpu.dot_dimension_numbers<[1], [0], [0], [1], [0, 0, 1, 1], [], []>} : vector<64x4xf32>, vector<4x256xf32>, vector<64x256xf32> -> vector<64x256xf32>
    %18 = vector.broadcast %3 : vector<64x1xf32> to vector<64x256xf32>
    %19 = arith.addf %17, %18 : vector<64x256xf32>
    %c0_14 = arith.constant 0 : index
    %c0_15 = arith.constant 0 : index
    %c0_16 = arith.constant 0 : index
    %20 = vector.load %arg7[%c0_14, %c0_15, %c0_16] : memref<1x64x256xf32, #tpu.memory_space<vmem>>, vector<1x64x256xf32>
    %21 = vector.shape_cast %20 : vector<1x64x256xf32> to vector<64x256xf32>
    %22 = vector.shape_cast %19 : vector<64x256xf32> to vector<1x64x256xf32>
    tpu.vector_store %arg7[%c0_14, %c0_15, %c0_16], %22 {strides = array<i32>} : memref<1x64x256xf32, #tpu.memory_space<vmem>>, vector<1x64x256xf32>,
    return
  }
  func.func @transform_0(%arg0: i32, %arg1: i32) -> (i32, i32, i32) {
    %c0_i32 = arith.constant 0 : i32
    %c0_i32_0 = arith.constant 0 : i32
    return %arg0, %c0_i32, %arg1 : i32, i32, i32
  }
  func.func @transform_1(%arg0: i32, %arg1: i32) -> (i32, i32) {
    %c0_i32 = arith.constant 0 : i32
    %c0_i32_0 = arith.constant 0 : i32
    %c0_i32_1 = arith.constant 0 : i32
    return %c0_i32, %c0_i32_0 : i32, i32
  }
  func.func @transform_2(%arg0: i32, %arg1: i32) -> (i32, i32) {
    %c0_i32 = arith.constant 0 : i32
    %c0_i32_0 = arith.constant 0 : i32
    %c0_i32_1 = arith.constant 0 : i32
    return %c0_i32, %c0_i32_0 : i32, i32
  }
  func.func @transform_3(%arg0: i32, %arg1: i32) -> (i32, i32) {
    %c0_i32 = arith.constant 0 : i32
    %c0_i32_0 = arith.constant 0 : i32
    %c0_i32_1 = arith.constant 0 : i32
    return %c0_i32, %c0_i32_0 : i32, i32
  }
  func.func @transform_4(%arg0: i32, %arg1: i32) -> (i32, i32) {
    %c0_i32 = arith.constant 0 : i32
    %c0_i32_0 = arith.constant 0 : i32
    %c0_i32_1 = arith.constant 0 : i32
    return %c0_i32, %c0_i32_0 : i32, i32
  }
  func.func @transform_5(%arg0: i32, %arg1: i32) -> (i32, i32, i32) {
    %c0_i32 = arith.constant 0 : i32
    %c0_i32_0 = arith.constant 0 : i32
    return %arg0, %c0_i32, %arg1 : i32, i32, i32
  }
}

</mosaic_0001>

<llo_original>
// kernel: tpu_custom_call.1
$region0: #{tpu_custom_call.1}
  #allocation0 [shape = 'u32[]', space=smem, size = 0x4, offset = 0x4, fixed_abs, tag = 'smem constant byte address 0x4 - core index']
  #allocation1 [shape = 'u32[144,128]{1,0:T(1,128)}', space=vmem, size = 0x12000, scoped, tag = 'internal scratch']
  %s0 = inlined_call_operand.hbm [shape: f32[2,64,256], index: 0, kind: input, shape index: {}]
  %s1 = inlined_call_operand.vmem [shape: f32[4,64], index: 1, kind: input, shape index: {}]
  %s2 = inlined_call_operand.vmem [shape: f32[4,1], index: 2, kind: input, shape index: {}]
  %s3 = inlined_call_operand.vmem [shape: f32[64,4], index: 3, kind: input, shape index: {}]
  %s4 = inlined_call_operand.vmem [shape: f32[64,1], index: 4, kind: input, shape index: {}]
  %s5 = inlined_call_operand.hbm [shape: f32[2,64,256], index: 5, kind: output, shape index: {}]
  %s6 = sld [smem:[#allocation0]]
  $region57: #{tpu_custom_call.1} parent=0
    _
  %s8 = ssub.s32 1, %s6
  %s9 = scalar_select 0, %s8, %s6
  $region1: #{tpu_custom_call.1} parent=0
    #allocation2 [shape = 'u8[131072]{0}', space=vmem, size = 0x20000, scoped, tag = 'input window, operand 0']
    #allocation3 [shape = 's32[2]{0}', space=sflag, size = 0x8, scoped, tag = 'scoped memory for tpu_custom_call.1']
    #allocation4 [shape = 's32[2]{0}', space=sflag, size = 0x8, scoped, tag = 'scoped memory for tpu_custom_call.1']
    #allocation5 [shape = 'u8[131072]{0}', space=vmem, size = 0x20000, scoped, tag = 'output window, operand 0']
    %10 = vsyncpa [#allocation3], 0
    %s11 = scalar_lea.sflag [#allocation3], 1
    %12 = vsyncpa %s11, 0
    %13 = vsyncpa [#allocation4], 0
    %s14 = scalar_lea.sflag [#allocation4], 1
    %15 = vsyncpa %s14, 0
    loop: start=0, step=1, limit=4
    $region2: #{tpu_custom_call.1} parent=1 // loop_pre_header
      _
    $region3: #{tpu_custom_call.1} parent=1 // loop_header
      %s17 = sphi 0, %s21
      %p18 = scmp.ge.s32.totalorder %s17, 4
      %s24 = sphi 0, %s36
      %s25 = sphi 0, %s32
      %s26 = sphi 0, %s24
      %s27 = sphi 0, %s25
      %s28 = sphi 0, %s26
      %s29 = sphi 0, %s27
      %s41 = sphi 0, %s43
      %s44 = sphi 0, %s41
      %s45 = sphi 0, %s44
      %s61 = sphi 0, %s45
      %s65 = sphi 0, %s65
      %s67 = sphi 0, %s65
      %s68 = sphi 0, %s67
      %s82 = sphi 0, %s68
      %s86 = sphi 0, %s86
      %s88 = sphi 0, %s86
      %s89 = sphi 0, %s88
      %s103 = sphi 0, %s89
      %s107 = sphi 0, %s107
      %s109 = sphi 0, %s107
      %s110 = sphi 0, %s109
      %s124 = sphi 0, %s110
      %s128 = sphi 0, %s128
      %s130 = sphi 0, %s128
      %s131 = sphi 0, %s130
      %s145 = sphi 0, %s131
      %s153 = sphi 0, %s155
      %s156 = sphi 0, %s153
      %s157 = sphi 0, %s156
      %s173 = sphi 0, %s157
    $region4: #{tpu_custom_call.1} parent=1 // loop_header_branch
      %20 = sbr.rel (%p18) target = $region8
    $region5: #{tpu_custom_call.1} parent=1 // loop_body
      %s22 = ssub.s32 %s17, 1
      %s23 = ssub.s32 %s17, 2
      %s30 = sadd.s32 1, %s25
      %p31 = scmp.ge.s32.totalorder %s30, 1
      %s32 = scalar_select %p31, 0, %s30
      %s33 = sadd.s32 1, %s24
      %s34 = scalar_select %p31, %s33, %s24
      %p35 = scmp.ge.s32.totalorder %s34, 2
      %s36 = scalar_select %p35, 0, %s34
      %s37 = ssub.s32 %s24, %s36
      %s38 = ssub.s32 %s25, %s32
      %s39 = sor.u32 %s37, %s38
      %p40 = scmp.eq.s32.totalorder %s39, 0
      %s42 = sadd.s32 %s41, 1
      %s43 = scalar_select %p40, %s41, %s42
      %p46 = pneg %p40
      %p47 = scmp.eq.s32.totalorder %s17, 1
      %p48 = por %p46, %p47
      %p49 = scmp.ne.s32.totalorder %s41, %s44
      %p50 = scmp.eq.s32.totalorder %s17, 0
      %p51 = por %p49, %p50
      %p52 = scmp.ne.s32.totalorder %s41, %s44
      %p53 = scmp.eq.s32.totalorder %s22, 1
      %p54 = por %p52, %p53
      %p55 = scmp.ne.s32.totalorder %s44, %s45
      %p56 = scmp.eq.s32.totalorder %s22, 0
      %p57 = por %p55, %p56
      %p58 = scmp.ne.s32.totalorder %s44, %s45
      %p59 = scmp.eq.s32.totalorder %s23, 1
      %p60 = por %p58, %p59
      %p62 = scmp.ne.s32.totalorder %s45, %s61
      %p63 = scmp.eq.s32.totalorder %s23, 0
      %p64 = por %p62, %p63
      %s66 = sadd.s32 %s65, 1
      %p69 = scmp.eq.s32.totalorder %s17, 1
      %p70 = scmp.ne.s32.totalorder %s65, %s67
      %p71 = scmp.eq.s32.totalorder %s17, 0
      %p72 = por %p70, %p71
      %p73 = scmp.ne.s32.totalorder %s65, %s67
      %p74 = scmp.eq.s32.totalorder %s22, 1
      %p75 = por %p73, %p74
      %p76 = scmp.ne.s32.totalorder %s67, %s68
      %p77 = scmp.eq.s32.totalorder %s22, 0
      %p78 = por %p76, %p77
      %p79 = scmp.ne.s32.totalorder %s67, %s68
      %p80 = scmp.eq.s32.totalorder %s23, 1
      %p81 = por %p79, %p80
      %p83 = scmp.ne.s32.totalorder %s68, %s82
      %p84 = scmp.eq.s32.totalorder %s23, 0
      %p85 = por %p83, %p84
      %s87 = sadd.s32 %s86, 1
      %p90 = scmp.eq.s32.totalorder %s17, 1
      %p91 = scmp.ne.s32.totalorder %s86, %s88
      %p92 = scmp.eq.s32.totalorder %s17, 0
      %p93 = por %p91, %p92
      %p94 = scmp.ne.s32.totalorder %s86, %s88
      %p95 = scmp.eq.s32.totalorder %s22, 1
      %p96 = por %p94, %p95
      %p97 = scmp.ne.s32.totalorder %s88, %s89
      %p98 = scmp.eq.s32.totalorder %s22, 0
      %p99 = por %p97, %p98
      %p100 = scmp.ne.s32.totalorder %s88, %s89
      %p101 = scmp.eq.s32.totalorder %s23, 1
      %p102 = por %p100, %p101
      %p104 = scmp.ne.s32.totalorder %s89, %s103
      %p105 = scmp.eq.s32.totalorder %s23, 0
      %p106 = por %p104, %p105
      %s108 = sadd.s32 %s107, 1
      %p111 = scmp.eq.s32.totalorder %s17, 1
      %p112 = scmp.ne.s32.totalorder %s107, %s109
      %p113 = scmp.eq.s32.totalorder %s17, 0
      %p114 = por %p112, %p113
      %p115 = scmp.ne.s32.totalorder %s107, %s109
      %p116 = scmp.eq.s32.totalorder %s22, 1
      %p117 = por %p115, %p116
      %p118 = scmp.ne.s32.totalorder %s109, %s110
      %p119 = scmp.eq.s32.totalorder %s22, 0
      %p120 = por %p118, %p119
      %p121 = scmp.ne.s32.totalorder %s109, %s110
      %p122 = scmp.eq.s32.totalorder %s23, 1
      %p123 = por %p121, %p122
      %p125 = scmp.ne.s32.totalorder %s110, %s124
      %p126 = scmp.eq.s32.totalorder %s23, 0
      %p127 = por %p125, %p126
      %s129 = sadd.s32 %s128, 1
      %p132 = scmp.eq.s32.totalorder %s17, 1
      %p133 = scmp.ne.s32.totalorder %s128, %s130
      %p134 = scmp.eq.s32.totalorder %s17, 0
      %p135 = por %p133, %p134
      %p136 = scmp.ne.s32.totalorder %s128, %s130
      %p137 = scmp.eq.s32.totalorder %s22, 1
      %p138 = por %p136, %p137
      %p139 = scmp.ne.s32.totalorder %s130, %s131
      %p140 = scmp.eq.s32.totalorder %s22, 0
      %p141 = por %p139, %p140
      %p142 = scmp.ne.s32.totalorder %s130, %s131
      %p143 = scmp.eq.s32.totalorder %s23, 1
      %p144 = por %p142, %p143
      %p146 = scmp.ne.s32.totalorder %s131, %s145
      %p147 = scmp.eq.s32.totalorder %s23, 0
      %p148 = por %p146, %p147
      %s149 = ssub.s32 %s24, %s36
      %s150 = ssub.s32 %s25, %s32
      %s151 = sor.u32 %s149, %s150
      %p152 = scmp.eq.s32.totalorder %s151, 0
      %s154 = sadd.s32 %s153, 1
      %s155 = scalar_select %p152, %s153, %s154
      %p158 = pneg %p152
      %p159 = scmp.eq.s32.totalorder %s17, 1
      %p160 = por %p158, %p159
      %p161 = scmp.ne.s32.totalorder %s153, %s156
      %p162 = scmp.eq.s32.totalorder %s17, 0
      %p163 = por %p161, %p162
      %p164 = scmp.ne.s32.totalorder %s153, %s156
      %p165 = scmp.eq.s32.totalorder %s22, 1
      %p166 = por %p164, %p165
      %p167 = scmp.ne.s32.totalorder %s156, %s157
      %p168 = scmp.eq.s32.totalorder %s22, 0
      %p169 = por %p167, %p168
      %p170 = scmp.ne.s32.totalorder %s156, %s157
      %p171 = scmp.eq.s32.totalorder %s23, 1
      %p172 = por %p170, %p171
      %p174 = scmp.ne.s32.totalorder %s157, %s173
      %p175 = scmp.eq.s32.totalorder %s23, 0
      %p176 = por %p174, %p175
      %p177 = scmp.le.s32.totalorder 1, %s17
      %p178 = scmp.lt.s32.totalorder %s17, 3
      %p179 = pnand %p177, %p178
      %p180 = pneg %p179
      // Predicated region
      $region9: #{tpu_custom_call.1} parent=5 // pred_check
        _
      $region10: #{tpu_custom_call.1} parent=5 // pred_check_branch
        %182 = sbr.rel (%p179) target = $region12
      $region11: #{tpu_custom_call.1} parent=5 // pred_region
        %s183 = ssub.s32 %s17, 1
        // Predicated region
        $region13: #{tpu_custom_call.1} parent=11 // pred_check
          %p184 = pneg %p78
        $region14: #{tpu_custom_call.1} parent=11 // pred_check_branch
          %186 = sbr.rel (%p184) target = $region16
        $region15: #{tpu_custom_call.1} parent=11 // pred_region
          _
        $region16: #{tpu_custom_call.1} parent=11 // pred_fallthru
          _
        // Predicated region
        $region17: #{tpu_custom_call.1} parent=11 // pred_check
          %p187 = pneg %p99
        $region18: #{tpu_custom_call.1} parent=11 // pred_check_branch
          %189 = sbr.rel (%p187) target = $region20
        $region19: #{tpu_custom_call.1} parent=11 // pred_region
          _
        $region20: #{tpu_custom_call.1} parent=11 // pred_fallthru
          _
        // Predicated region
        $region21: #{tpu_custom_call.1} parent=11 // pred_check
          %p190 = pneg %p120
        $region22: #{tpu_custom_call.1} parent=11 // pred_check_branch
          %192 = sbr.rel (%p190) target = $region24
        $region23: #{tpu_custom_call.1} parent=11 // pred_region
          _
        $region24: #{tpu_custom_call.1} parent=11 // pred_fallthru
          _
        // Predicated region
        $region25: #{tpu_custom_call.1} parent=11 // pred_check
          %p193 = pneg %p141
        $region26: #{tpu_custom_call.1} parent=11 // pred_check_branch
          %195 = sbr.rel (%p193) target = $region28
        $region27: #{tpu_custom_call.1} parent=11 // pred_region
          _
        $region28: #{tpu_custom_call.1} parent=11 // pred_fallthru
          _
      $region12: #{tpu_custom_call.1} parent=5 // pred_fallthru
        _
      %p196 = scmp.lt.s32.totalorder %s17, 2
      // Predicated region
      $region29: #{tpu_custom_call.1} parent=5 // pred_check
        %p197 = pneg %p196
      $region30: #{tpu_custom_call.1} parent=5 // pred_check_branch
        %199 = sbr.rel (%p197) target = $region32
      $region31: #{tpu_custom_call.1} parent=5 // pred_region
        // Predicated region
        $region33: #{tpu_custom_call.1} parent=31 // pred_check
          %p200 = pneg %p51
        $region34: #{tpu_custom_call.1} parent=31 // pred_check_branch
          %202 = sbr.rel (%p200) target = $region36
        $region35: #{tpu_custom_call.1} parent=31 // pred_region
          %s203 = sand.u32 %s41, 1
          %s204 = scalar_lea.sflag [#allocation3], %s203
          %s205 = sand.u32 %s41, 1
          %s206 = smul.addr %s205, 128
          %s207 = scalar_lea.vmem [#allocation2], %s206
          %s208 = smul.u32 2, %s25
          %s210 = ssub.s32 2048, 2048
          %211 = vsyncadd %s204, %s210
          %s212 = smul.addr %s24, 16
          %s213 = sadd.s32 %s208, %s212
          %s214 = smul.addr %s213, 128
          %s215 = scalar_lea.hbm %s0, %s214
          %s216 = sshll.u32 %s207, 4
          %s217 = int_to_ptr.vmem [resolvable:$true] %s216
          %222 = dma.hbm_to_vmem [thread:$0]  %s215, 2048, %s217, %s204, 256, 256, 16
        $region36: #{tpu_custom_call.1} parent=31 // pred_fallthru
          _
      $region32: #{tpu_custom_call.1} parent=5 // pred_fallthru
        _
      %p223 = scmp.le.s32.totalorder 1, %s17
      %p224 = scmp.lt.s32.totalorder %s17, 3
      %p225 = pnand %p223, %p224
      %p226 = pneg %p225
      // Predicated region
      $region37: #{tpu_custom_call.1} parent=5 // pred_check
        _
      $region38: #{tpu_custom_call.1} parent=5 // pred_check_branch
        %228 = sbr.rel (%p225) target = $region40
      $region39: #{tpu_custom_call.1} parent=5 // pred_region
        %s229 = ssub.s32 %s17, 1
        %s230 = sand.u32 %s44, 1
        %s231 = scalar_lea.sflag [#allocation3], %s230
        %s232 = sand.u32 %s44, 1
        %s233 = smul.addr %s232, 128
        %s234 = scalar_lea.vmem [#allocation2], %s233
        // Predicated region
        $region41: #{tpu_custom_call.1} parent=39 // pred_check
          %p235 = pneg %p57
        $region42: #{tpu_custom_call.1} parent=39 // pred_check_branch
          %237 = sbr.rel (%p235) target = $region44
        $region43: #{tpu_custom_call.1} parent=39 // pred_region
          %238 = dma.done %s231, 2048
        $region44: #{tpu_custom_call.1} parent=39 // pred_fallthru
          _
        %s239 = sand.u32 %s44, 1
        %s240 = scalar_lea.sflag [#allocation3], %s239
        %s241 = sand.u32 %s44, 1
        %s242 = smul.addr %s241, 128
        %s243 = scalar_lea.vmem [#allocation2], %s242
        %p244 = pneg %p57
        %p245 = pneg %p54
        %p246 = pneg %p78
        %p247 = pneg %p75
        %p248 = pneg %p99
        %p249 = pneg %p96
        %p250 = pneg %p120
        %p251 = pneg %p117
        %p252 = pneg %p141
        %p253 = pneg %p138
        %p254 = pneg %p169
        %p255 = pneg %p166
        %s256 = sand.u32 %s156, 1
        %s257 = scalar_lea.sflag [#allocation4], %s256
        %s258 = sand.u32 %s156, 1
        %s259 = smul.addr %s258, 128
        %s260 = scalar_lea.vmem [#allocation5], %s259
        %s261 = smul.u32 2, %s27
        %s262 = smul.u32 2, %s27
        %v263 = vld [vmem:[%s1] sm:$0xf]
        %v264 = vld [vmem:[%s3] sm:$0xff]
        %v265 = vld [vmem:[%s3 + $0x8] sm:$0xff]
        %v266 = vld [vmem:[%s3 + $0x10] sm:$0xff]
        %v267 = vld [vmem:[%s3 + $0x18] sm:$0xff]
        %v268 = vld [vmem:[%s3 + $0x20] sm:$0xff]
        %v269 = vld [vmem:[%s3 + $0x28] sm:$0xff]
        %v270 = vld [vmem:[%s3 + $0x30] sm:$0xff]
        %v271 = vld [vmem:[%s3 + $0x38] sm:$0xff]
        %v272 = vld [vmem:[%s2] sm:$0xf]
        %v273 = vld [vmem:[%s4] sm:$0xff]
        %v274 = vld [vmem:[%s4 + $0x8] sm:$0xff]
        %v275 = vld [vmem:[%s4 + $0x10] sm:$0xff]
        %v276 = vld [vmem:[%s4 + $0x18] sm:$0xff]
        %v277 = vld [vmem:[%s4 + $0x20] sm:$0xff]
        %v278 = vld [vmem:[%s4 + $0x28] sm:$0xff]
        %v279 = vld [vmem:[%s4 + $0x30] sm:$0xff]
        %v280 = vld [vmem:[%s4 + $0x38] sm:$0xff]
        %v281 = vld [vmem:[%s234] sm:$0xff]
        %v282 = vld [vmem:[%s234 + $0x8] sm:$0xff]
        %v283 = vld [vmem:[%s234 + $0x10] sm:$0xff]
        %v284 = vld [vmem:[%s234 + $0x18] sm:$0xff]
        %v285 = vld [vmem:[%s234 + $0x20] sm:$0xff]
        %v286 = vld [vmem:[%s234 + $0x28] sm:$0xff]
        %v287 = vld [vmem:[%s234 + $0x30] sm:$0xff]
        %v288 = vld [vmem:[%s234 + $0x38] sm:$0xff]
        %v289 = vld [vmem:[%s234 + $0x40] sm:$0xff]
        %v290 = vld [vmem:[%s234 + $0x48] sm:$0xff]
        %v291 = vld [vmem:[%s234 + $0x50] sm:$0xff]
        %v292 = vld [vmem:[%s234 + $0x58] sm:$0xff]
        %v293 = vld [vmem:[%s234 + $0x60] sm:$0xff]
        %v294 = vld [vmem:[%s234 + $0x68] sm:$0xff]
        %v295 = vld [vmem:[%s234 + $0x70] sm:$0xff]
        %v296 = vld [vmem:[%s234 + $0x78] sm:$0xff]
        %298 = vset.pattern.permute.xlu0 0
        %299 = vperm.xlu0 %298, %v272
        %v300 = vpop.permute.xlu0 %299
        %vm302 = vcmask 523264
        %v304 = vsel %vm302, %v263, 0
        %306 = vmatprep.subr.mxu0 %v282
        %307 = vmatpush1.msra.mxu0 %v281
        %308 = vmatprep.subr.mxu0 %v284
        %309 = vmatpush1.msra.mxu0 %v283
        %310 = vmatprep.subr.mxu0 %v286
        %311 = vmatpush1.msra.mxu0 %v285
        %312 = vmatprep.subr.mxu0 %v288
        %313 = vmatpush1.msra.mxu0 %v287
        %314 = vmatprep.subr.mxu0 %v290
        %315 = vmatpush1.msra.mxu0 %v289
        %316 = vmatprep.subr.mxu0 %v292
        %317 = vmatpush1.msra.mxu0 %v291
        %318 = vmatprep.subr.mxu0 %v294
        %319 = vmatpush1.msra.mxu0 %v293
        %320 = vmatprep.subr.mxu0 %v296
        %321 = vmatpush1.msra.mxu0 %v295
        %322 = vmatprep.subr.mxu0 0.0
        %323 = vmatpush1.msra.mxu0 0.0
        %324 = vmatprep.subr.mxu0 0.0
        %325 = vmatpush1.msra.mxu0 0.0
        %326 = vmatprep.subr.mxu0 0.0
        %327 = vmatpush1.msra.mxu0 0.0
        %328 = vmatprep.subr.mxu0 0.0
        %329 = vmatpush1.msra.mxu0 0.0
        %330 = vmatprep.subr.mxu0 0.0
        %331 = vmatpush1.msra.mxu0 0.0
        %332 = vmatprep.subr.mxu0 0.0
        %333 = vmatpush1.msra.mxu0 0.0
        %334 = vmatprep.subr.mxu0 0.0
        %335 = vmatpush1.msra.mxu0 0.0
        %336 = vmatprep.subr.mxu0 0.0
        %337 = vmatpush1.msra.mxu0 0.0
        %338 = vmatprep.subr.mxu0 0.0
        %339 = vmatpush1.msra.mxu0 0.0
        %340 = vmatprep.subr.mxu0 0.0
        %341 = vmatpush1.msra.mxu0 0.0
        %342 = vmatprep.subr.mxu0 0.0
        %343 = vmatpush1.msra.mxu0 0.0
        %344 = vmatprep.subr.mxu0 0.0
        %345 = vmatpush1.msra.mxu0 0.0
        %346 = vmatprep.subr.mxu0 0.0
        %347 = vmatpush1.msra.mxu0 0.0
        %348 = vmatprep.subr.mxu0 0.0
        %349 = vmatpush1.msra.mxu0 0.0
        %350 = vmatprep.subr.mxu0 0.0
        %351 = vmatpush1.msra.mxu0 0.0
        %352 = vmatprep.subr.mxu0 0.0
        %353 = vmatpush1.msra.mxu0 0.0
        %354 = vmatprep.subr.mxu0 0.0
        %355 = vmatpush1.msra.mxu0 0.0
        %356 = vmatprep.subr.mxu0 0.0
        %357 = vmatpush1.msra.mxu0 0.0
        %358 = vmatprep.subr.mxu0 0.0
        %359 = vmatpush1.msra.mxu0 0.0
        %360 = vmatprep.subr.mxu0 0.0
        %361 = vmatpush1.msra.mxu0 0.0
        %362 = vmatprep.subr.mxu0 0.0
        %363 = vmatpush1.msra.mxu0 0.0
        %364 = vmatprep.subr.mxu0 0.0
        %365 = vmatpush1.msra.mxu0 0.0
        %366 = vmatprep.subr.mxu0 0.0
        %367 = vmatpush1.msra.mxu0 0.0
        %368 = vmatprep.subr.mxu0 0.0
        %369 = vmatpush1.msra.mxu0 0.0
        %370 = vmatprep.mubr.f32.mxu0 0.0
        %371 = vmatmul.mubr.f32.gmra.mrb[0].mxu0 %v304
        %v372 = vpop.f32.mrb[0].mxu0
        %v373 = vadd.f32 %v300, %v372
        %v374 = vpop.f32.mrb[0].mxu0
        %v375 = vadd.f32 %v300, %v374
        %376 = vdwg.mxu0
        %v377 = vmul.f32 %v373, 0.5
        %v378 = vmul.f32 %v375, 0.5
        %v379 = vmul.f32 %v373, 0.70710677
        %v380 = vmul.f32 %v375, 0.70710677
        %v381 = verf.f32.pop %v379
        %v382 = verf.f32.pop %v380
        %v383 = vadd.f32 %v381, 1.0
        %v384 = vadd.f32 %v382, 1.0
        %v385 = vmul.f32 %v377, %v383
        %v386 = vmul.f32 %v378, %v384
        %388 = vset.pattern.permute.xlu0 0
        %389 = vperm.xlu0 %388, %v273
        %v390 = vpop.permute.xlu0 %389
        %393 = vset.pattern.permute.xlu0 0
        %394 = vperm.xlu0 %393, %v274
        %v395 = vpop.permute.xlu0 %394
        %398 = vset.pattern.permute.xlu0 0
        %399 = vperm.xlu0 %398, %v275
        %v400 = vpop.permute.xlu0 %399
        %403 = vset.pattern.permute.xlu0 0
        %404 = vperm.xlu0 %403, %v276
        %v405 = vpop.permute.xlu0 %404
        %408 = vset.pattern.permute.xlu0 0
        %409 = vperm.xlu0 %408, %v277
        %v410 = vpop.permute.xlu0 %409
        %413 = vset.pattern.permute.xlu0 0
        %414 = vperm.xlu0 %413, %v278
        %v415 = vpop.permute.xlu0 %414
        %418 = vset.pattern.permute.xlu0 0
        %419 = vperm.xlu0 %418, %v279
        %v420 = vpop.permute.xlu0 %419
        %423 = vset.pattern.permute.xlu0 0
        %424 = vperm.xlu0 %423, %v280
        %v425 = vpop.permute.xlu0 %424
        %vm427 = vcmask 31744
        %v429 = vsel %vm427, %v264, 0
        %v432 = vsel %vm427, %v265, 0
        %v435 = vsel %vm427, %v266, 0
        %v438 = vsel %vm427, %v267, 0
        %v441 = vsel %vm427, %v268, 0
        %v444 = vsel %vm427, %v269, 0
        %v447 = vsel %vm427, %v270, 0
        %v450 = vsel %vm427, %v271, 0
        %vm452 = vcmask 1043456
        %v454 = vsel %vm452, %v385, 0
        %v457 = vsel %vm452, %v386, 0
        %459 = vmatprep.subr.mxu0 %v457
        %460 = vmatpush1.msra.mxu0 %v454
        %461 = vmatprep.subr.mxu0 0.0
        %462 = vmatpush1.msra.mxu0 0.0
        %463 = vmatprep.subr.mxu0 0.0
        %464 = vmatpush1.msra.mxu0 0.0
        %465 = vmatprep.subr.mxu0 0.0
        %466 = vmatpush1.msra.mxu0 0.0
        %467 = vmatprep.subr.mxu0 0.0
        %468 = vmatpush1.msra.mxu0 0.0
        %469 = vmatprep.subr.mxu0 0.0
        %470 = vmatpush1.msra.mxu0 0.0
        %471 = vmatprep.subr.mxu0 0.0
        %472 = vmatpush1.msra.mxu0 0.0
        %473 = vmatprep.subr.mxu0 0.0
        %474 = vmatpush1.msra.mxu0 0.0
        %475 = vmatprep.subr.mxu0 0.0
        %476 = vmatpush1.msra.mxu0 0.0
        %477 = vmatprep.subr.mxu0 0.0
        %478 = vmatpush1.msra.mxu0 0.0
        %479 = vmatprep.subr.mxu0 0.0
        %480 = vmatpush1.msra.mxu0 0.0
        %481 = vmatprep.subr.mxu0 0.0
        %482 = vmatpush1.msra.mxu0 0.0
        %483 = vmatprep.subr.mxu0 0.0
        %484 = vmatpush1.msra.mxu0 0.0
        %485 = vmatprep.subr.mxu0 0.0
        %486 = vmatpush1.msra.mxu0 0.0
        %487 = vmatprep.subr.mxu0 0.0
        %488 = vmatpush1.msra.mxu0 0.0
        %489 = vmatprep.subr.mxu0 0.0
        %490 = vmatpush1.msra.mxu0 0.0
        %491 = vmatprep.subr.mxu0 0.0
        %492 = vmatpush1.msra.mxu0 0.0
        %493 = vmatprep.subr.mxu0 0.0
        %494 = vmatpush1.msra.mxu0 0.0
        %495 = vmatprep.subr.mxu0 0.0
        %496 = vmatpush1.msra.mxu0 0.0
        %497 = vmatprep.subr.mxu0 0.0
        %498 = vmatpush1.msra.mxu0 0.0
        %499 = vmatprep.subr.mxu0 0.0
        %500 = vmatpush1.msra.mxu0 0.0
        %501 = vmatprep.subr.mxu0 0.0
        %502 = vmatpush1.msra.mxu0 0.0
        %503 = vmatprep.subr.mxu0 0.0
        %504 = vmatpush1.msra.mxu0 0.0
        %505 = vmatprep.subr.mxu0 0.0
        %506 = vmatpush1.msra.mxu0 0.0
        %507 = vmatprep.subr.mxu0 0.0
        %508 = vmatpush1.msra.mxu0 0.0
        %509 = vmatprep.subr.mxu0 0.0
        %510 = vmatpush1.msra.mxu0 0.0
        %511 = vmatprep.subr.mxu0 0.0
        %512 = vmatpush1.msra.mxu0 0.0
        %513 = vmatprep.subr.mxu0 0.0
        %514 = vmatpush1.msra.mxu0 0.0
        %515 = vmatprep.subr.mxu0 0.0
        %516 = vmatpush1.msra.mxu0 0.0
        %517 = vmatprep.subr.mxu0 0.0
        %518 = vmatpush1.msra.mxu0 0.0
        %519 = vmatprep.subr.mxu0 0.0
        %520 = vmatpush1.msra.mxu0 0.0
        %521 = vmatprep.subr.mxu0 0.0
        %522 = vmatpush1.msra.mxu0 0.0
        %523 = vmatprep.mubr.f32.mxu0 0.0
        %524 = vmatmul.mubr.f32.gmra.mrb[0].mxu0 %v429
        %v525 = vpop.f32.mrb[0].mxu0
        %v526 = vadd.f32 %v390, %v525
        %v527 = vpop.f32.mrb[0].mxu0
        %v528 = vadd.f32 %v390, %v527
        %529 = vmatprep.mubr.f32.mxu0 0.0
        %530 = vmatmul.mubr.f32.gmra.mrb[0].mxu0 %v432
        %v531 = vpop.f32.mrb[0].mxu0
        %v532 = vadd.f32 %v395, %v531
        %v533 = vpop.f32.mrb[0].mxu0
        %v534 = vadd.f32 %v395, %v533
        %535 = vmatprep.mubr.f32.mxu0 0.0
        %536 = vmatmul.mubr.f32.gmra.mrb[0].mxu0 %v435
        %v537 = vpop.f32.mrb[0].mxu0
        %v538 = vadd.f32 %v400, %v537
        %v539 = vpop.f32.mrb[0].mxu0
        %v540 = vadd.f32 %v400, %v539
        %541 = vmatprep.mubr.f32.mxu0 0.0
        %542 = vmatmul.mubr.f32.gmra.mrb[0].mxu0 %v438
        %v543 = vpop.f32.mrb[0].mxu0
        %v544 = vadd.f32 %v405, %v543
        %v545 = vpop.f32.mrb[0].mxu0
        %v546 = vadd.f32 %v405, %v545
        %547 = vmatprep.mubr.f32.mxu0 0.0
        %548 = vmatmul.mubr.f32.gmra.mrb[0].mxu0 %v441
        %v549 = vpop.f32.mrb[0].mxu0
        %v550 = vadd.f32 %v410, %v549
        %v551 = vpop.f32.mrb[0].mxu0
        %v552 = vadd.f32 %v410, %v551
        %553 = vmatprep.mubr.f32.mxu0 0.0
        %554 = vmatmul.mubr.f32.gmra.mrb[0].mxu0 %v444
        %v555 = vpop.f32.mrb[0].mxu0
        %v556 = vadd.f32 %v415, %v555
        %v557 = vpop.f32.mrb[0].mxu0
        %v558 = vadd.f32 %v415, %v557
        %559 = vmatprep.mubr.f32.mxu0 0.0
        %560 = vmatmul.mubr.f32.gmra.mrb[0].mxu0 %v447
        %v561 = vpop.f32.mrb[0].mxu0
        %v562 = vadd.f32 %v420, %v561
        %v563 = vpop.f32.mrb[0].mxu0
        %v564 = vadd.f32 %v420, %v563
        %565 = vmatprep.mubr.f32.mxu0 0.0
        %566 = vmatmul.mubr.f32.gmra.mrb[0].mxu0 %v450
        %v567 = vpop.f32.mrb[0].mxu0
        %v568 = vadd.f32 %v425, %v567
        %v569 = vpop.f32.mrb[0].mxu0
        %v570 = vadd.f32 %v425, %v569
        %571 = vdwg.mxu0
        %572 = vst [vmem:[%s260] sm:$0xff] %v526
        %573 = vst [vmem:[%s260 + $0x8] sm:$0xff] %v528
        %574 = vst [vmem:[%s260 + $0x10] sm:$0xff] %v532
        %575 = vst [vmem:[%s260 + $0x18] sm:$0xff] %v534
        %576 = vst [vmem:[%s260 + $0x20] sm:$0xff] %v538
        %577 = vst [vmem:[%s260 + $0x28] sm:$0xff] %v540
        %578 = vst [vmem:[%s260 + $0x30] sm:$0xff] %v544
        %579 = vst [vmem:[%s260 + $0x38] sm:$0xff] %v546
        %580 = vst [vmem:[%s260 + $0x40] sm:$0xff] %v550
        %581 = vst [vmem:[%s260 + $0x48] sm:$0xff] %v552
        %582 = vst [vmem:[%s260 + $0x50] sm:$0xff] %v556
        %583 = vst [vmem:[%s260 + $0x58] sm:$0xff] %v558
        %584 = vst [vmem:[%s260 + $0x60] sm:$0xff] %v562
        %585 = vst [vmem:[%s260 + $0x68] sm:$0xff] %v564
        %586 = vst [vmem:[%s260 + $0x70] sm:$0xff] %v568
        %587 = vst [vmem:[%s260 + $0x78] sm:$0xff] %v570
        %s588 = sand.u32 %s156, 1
        %s589 = scalar_lea.sflag [#allocation4], %s588
        %s590 = sand.u32 %s156, 1
        %s591 = smul.addr %s590, 128
        %s592 = scalar_lea.vmem [#allocation5], %s591
        // Predicated region
        $region45: #{tpu_custom_call.1} parent=39 // pred_check
          %p593 = pneg %p166
        $region46: #{tpu_custom_call.1} parent=39 // pred_check_branch
          %595 = sbr.rel (%p593) target = $region48
        $region47: #{tpu_custom_call.1} parent=39 // pred_region
          %s596 = smul.u32 2, %s27
          %s598 = ssub.s32 2048, 2048
          %599 = vsyncadd %s589, %s598
          %s600 = smul.addr %s26, 16
          %s601 = sadd.s32 %s596, %s600
          %s602 = smul.addr %s601, 128
          %s603 = scalar_lea.hbm %s5, %s602
          %s604 = sshll.u32 %s592, 4
          %s605 = int_to_ptr.vmem [resolvable:$true] %s604
          %610 = dma.vmem_to_hbm [thread:$0]  %s605, 2048, %s603, %s589, 256, 256, 16
        $region48: #{tpu_custom_call.1} parent=39 // pred_fallthru
          _
      $region40: #{tpu_custom_call.1} parent=5 // pred_fallthru
        _
      %p611 = scmp.le.s32.totalorder 2, %s17
      // Predicated region
      $region49: #{tpu_custom_call.1} parent=5 // pred_check
        %p612 = pneg %p611
      $region50: #{tpu_custom_call.1} parent=5 // pred_check_branch
        %614 = sbr.rel (%p612) target = $region52
      $region51: #{tpu_custom_call.1} parent=5 // pred_region
        %s615 = ssub.s32 %s17, 2
        // Predicated region
        $region53: #{tpu_custom_call.1} parent=51 // pred_check
          %p616 = pneg %p172
        $region54: #{tpu_custom_call.1} parent=51 // pred_check_branch
          %618 = sbr.rel (%p616) target = $region56
        $region55: #{tpu_custom_call.1} parent=51 // pred_region
          %s619 = sand.u32 %s157, 1
          %s620 = scalar_lea.sflag [#allocation4], %s619
          %s621 = sand.u32 %s157, 1
          %s622 = smul.addr %s621, 128
          %s623 = scalar_lea.vmem [#allocation5], %s622
          %624 = dma.done %s620, 2048
        $region56: #{tpu_custom_call.1} parent=51 // pred_fallthru
          _
      $region52: #{tpu_custom_call.1} parent=5 // pred_fallthru
        _
    $region6: #{tpu_custom_call.1} parent=1 // loop_footer
      %s21 = sadd.s32 1, %s17
    $region7: #{tpu_custom_call.1} parent=1 // loop_footer_branch
      %16 = sbr.rel target = $region3
    $region8: #{tpu_custom_call.1} parent=1 // loop_exit
      _
    %625 = vsyncpa [#allocation3], 1
    %s626 = scalar_lea.sflag [#allocation3], 1
    %627 = vsyncpa %s626, 1
    %628 = vsyncpa [#allocation4], 1
    %s629 = scalar_lea.sflag [#allocation4], 1
    %630 = vsyncpa %s629, 1

</llo_original>
